<compile_context>
chip_gen: v5e
topology: v5e:2x2
jax: 0.10.0
libtpu: 0.0.40
codegen_flags: <defaults>
</compile_context>

<pallas_src>
import jax
import jax.numpy as jnp
from jax.experimental import pallas as pl
from jax.experimental.pallas import tpu as pltpu


def _round_up(x, m):
    return ((x + m - 1) // m) * m


def _ctod_kernel(pred_ref, gt_ref, out_ref, acc_ref):
    """Grid = (plane_blocks, h_blocks); h (reduction) axis is last.

    pred_ref, gt_ref : VMEM tiles of shape (TB, TH, W), input dtype
    out_ref          : VMEM tile  of shape (1, 1, W), f32 — per-block partial
                       (sum over the TB planes of squared per-column CTOD diff)
    acc_ref          : VMEM scratch (TB, W), f32 — per-plane per-column CTOD
                       difference accumulated across H chunks
    """
    h = pl.program_id(1)

    @pl.when(h == 0)
    def _init():
        acc_ref[...] = jnp.zeros_like(acc_ref)

    # Single H reduction on the difference (instead of two separate ones).
    d = pred_ref[...].astype(jnp.float32) - gt_ref[...].astype(jnp.float32)
    acc_ref[...] += jnp.sum(d, axis=1)  # (TB, W)

    @pl.when(h == pl.num_programs(1) - 1)
    def _finalize():
        ctod = acc_ref[...]                                   # (TB, W)
        sq_cols = jnp.sum(ctod * ctod, axis=0, keepdims=True)  # (1, W)
        out_ref[...] = sq_cols[None]                           # (1, 1, W)


def ctod_loss(predicted_image, ground_truth, *, vmem_tile_budget_bytes=2 << 20):
    """CTOD loss between predicted and ground-truth crack images (NCHW)."""
    assert predicted_image.shape == ground_truth.shape
    B, C, H, W = predicted_image.shape
    BC = B * C
    itemsize = jnp.dtype(predicted_image.dtype).itemsize

    pred = predicted_image.reshape(BC, H, W)
    gt = ground_truth.reshape(BC, H, W)

    # ---- tile sizing (per-input VMEM tile <= budget; x2 inputs x2 buffers) ----
    lane_w = _round_up(W, 128)                 # lane padding inside VMEM
    row_bytes = lane_w * itemsize              # one padded image row
    plane_bytes = _round_up(H, 8) * row_bytes  # one padded image plane

    if plane_bytes <= vmem_tile_budget_bytes:
        TH = H                                                  # full plane fits
        TB = max(1, min(BC, vmem_tile_budget_bytes // plane_bytes))
    else:
        TB = 1                                                  # tile the H axis
        TH = max(8, (vmem_tile_budget_bytes // (8 * row_bytes)) * 8)
        TH = min(TH, _round_up(H, 8))

    nb = -(-BC // TB)
    nh = -(-H // TH)

    # Zero-pad the plane and H axes (zeros contribute nothing to row sums or
    # squared differences, so the loss is unchanged).
    BC_pad, H_pad = nb * TB, nh * TH
    if BC_pad != BC or H_pad != H:
        widths = ((0, BC_pad - BC), (0, H_pad - H), (0, 0))
        pred = jnp.pad(pred, widths)
        gt = jnp.pad(gt, widths)

    flops = 2 * BC_pad * H_pad * W + 2 * BC_pad * W
    bytes_accessed = 2 * BC_pad * H_pad * W * itemsize + nb * W * 4

    partials = pl.pallas_call(
        _ctod_kernel,
        out_shape=jax.ShapeDtypeStruct((nb, 1, W), jnp.float32),
        grid_spec=pltpu.PrefetchScalarGridSpec(
            num_scalar_prefetch=0,
            grid=(nb, nh),
            in_specs=[
                pl.BlockSpec((TB, TH, W), lambda i, h: (i, h, 0)),
                pl.BlockSpec((TB, TH, W), lambda i, h: (i, h, 0)),
            ],
            out_specs=pl.BlockSpec((1, 1, W), lambda i, h: (i, 0, 0)),
            scratch_shapes=[pltpu.VMEM((TB, W), jnp.float32)],
        ),
        compiler_params=pltpu.CompilerParams(
            dimension_semantics=("parallel", "arbitrary"),
        ),
        cost_estimate=pl.CostEstimate(
            flops=flops, transcendentals=0, bytes_accessed=bytes_accessed),
    )(pred, gt)

    # Tiny final reduction + mean over the true (B*C*W) column count.
    return jnp.sum(partials) / jnp.float32(B * C * W)


def _reference(predicted_image, ground_truth):
    ctod_p = jnp.sum(predicted_image.astype(jnp.float32), axis=2)  # (B, C, W)
    ctod_g = jnp.sum(ground_truth.astype(jnp.float32), axis=2)
    return jnp.mean((ctod_p - ctod_g) ** 2)


if __name__ == "__main__":
    key = jax.random.PRNGKey(0)
    k1, k2 = jax.random.split(key)

    # Small crack-image-like inputs, NCHW.
    B, C, H, W = 2, 4, 16, 16
    predicted_image = jax.random.uniform(k1, (B, C, H, W), dtype=jnp.float32)
    ground_truth = jax.random.uniform(k2, (B, C, H, W), dtype=jnp.float32)

    ref = _reference(predicted_image, ground_truth)

    # Default path: whole planes batched per block, single H chunk.
    loss = ctod_loss(predicted_image, ground_truth)
    jax.block_until_ready(loss)
    assert jnp.allclose(loss, ref, rtol=1e-5, atol=1e-5), (loss, ref)

    # Force the H-tiling / accumulation path with a tiny VMEM tile budget.
    loss_tiled = ctod_loss(predicted_image, ground_truth,
                           vmem_tile_budget_bytes=4096)
    jax.block_until_ready(loss_tiled)
    assert jnp.allclose(loss_tiled, ref, rtol=1e-5, atol=1e-5), (loss_tiled, ref)

    print("KERNEL_OK")
</pallas_src>

<mosaic_0001>
module attributes {stable_mosaic.version = 11 : i64} {
  func.func @_ctod_kernel(%arg0: i32, %arg1: i32, %arg2: memref<8x16x16xf32, #tpu.memory_space<vmem>>, %arg3: memref<8x16x16xf32, #tpu.memory_space<vmem>>, %arg4: memref<1x1x16xf32, #tpu.memory_space<vmem>>, %arg5: memref<8x16xf32, #tpu.memory_space<vmem>>) attributes {dimension_semantics = [#tpu.dimension_semantics<parallel>, #tpu.dimension_semantics<arbitrary>], iteration_bounds = array<i64: 1, 1>, scalar_prefetch = 0 : i64, scratch_operands = 1 : i64, tpu.core_type = #tpu.core_type<tc>, window_params = [{transform_indices = @transform_0, window_bounds = array<i64: 8, 16, 16>}, {transform_indices = @transform_1, window_bounds = array<i64: 8, 16, 16>}, {transform_indices = @transform_2, window_bounds = array<i64: 1, 1, 16>}]} {
    %c0_i32 = arith.constant 0 : i32
    %0 = arith.cmpi eq, %arg1, %c0_i32 : i32
    %1 = arith.extui %0 : i1 to i32
    %c0_i32_0 = arith.constant 0 : i32
    %2 = arith.cmpi ne, %1, %c0_i32_0 : i32
    scf.if %2 {
      %cst_12 = arith.constant 0.000000e+00 : f32
      %13 = vector.broadcast %cst_12 : f32 to vector<8x16xf32>
      %c0_13 = arith.constant 0 : index
      %c0_14 = arith.constant 0 : index
      %14 = vector.load %arg5[%c0_13, %c0_14] : memref<8x16xf32, #tpu.memory_space<vmem>>, vector<8x16xf32>
      tpu.vector_store %arg5[%c0_13, %c0_14], %13 {strides = array<i32>} : memref<8x16xf32, #tpu.memory_space<vmem>>, vector<8x16xf32>,
    } else {
    }
    %c0 = arith.constant 0 : index
    %c0_1 = arith.constant 0 : index
    %c0_2 = arith.constant 0 : index
    %3 = vector.load %arg2[%c0, %c0_1, %c0_2] : memref<8x16x16xf32, #tpu.memory_space<vmem>>, vector<8x16x16xf32>
    %c0_3 = arith.constant 0 : index
    %c0_4 = arith.constant 0 : index
    %c0_5 = arith.constant 0 : index
    %4 = vector.load %arg3[%c0_3, %c0_4, %c0_5] : memref<8x16x16xf32, #tpu.memory_space<vmem>>, vector<8x16x16xf32>
    %5 = arith.subf %3, %4 : vector<8x16x16xf32>
    %c0_6 = arith.constant 0 : index
    %c0_7 = arith.constant 0 : index
    %6 = vector.load %arg5[%c0_6, %c0_7] : memref<8x16xf32, #tpu.memory_space<vmem>>, vector<8x16xf32>
    %cst = arith.constant dense<0.000000e+00> : vector<8x16xf32>
    %7 = vector.multi_reduction <add>, %5, %cst [1] : vector<8x16x16xf32> to vector<8x16xf32>
    %8 = arith.addf %6, %7 : vector<8x16xf32>
    %c0_8 = arith.constant 0 : index
    %c0_9 = arith.constant 0 : index
    %9 = vector.load %arg5[%c0_8, %c0_9] : memref<8x16xf32, #tpu.memory_space<vmem>>, vector<8x16xf32>
    tpu.vector_store %arg5[%c0_8, %c0_9], %8 {strides = array<i32>} : memref<8x16xf32, #tpu.memory_space<vmem>>, vector<8x16xf32>,
    %c0_i32_10 = arith.constant 0 : i32
    %10 = arith.cmpi eq, %arg1, %c0_i32_10 : i32
    %11 = arith.extui %10 : i1 to i32
    %c0_i32_11 = arith.constant 0 : i32
    %12 = arith.cmpi ne, %11, %c0_i32_11 : i32
    scf.if %12 {
      %c0_12 = arith.constant 0 : index
      %c0_13 = arith.constant 0 : index
      %13 = vector.load %arg5[%c0_12, %c0_13] : memref<8x16xf32, #tpu.memory_space<vmem>>, vector<8x16xf32>
      %14 = arith.mulf %13, %13 : vector<8x16xf32>
      %cst_14 = arith.constant dense<0.000000e+00> : vector<16xf32>
      %15 = vector.multi_reduction <add>, %14, %cst_14 [0] : vector<8x16xf32> to vector<16xf32>
      %16 = vector.shape_cast %15 : vector<16xf32> to vector<1x16xf32>
      %17 = vector.shape_cast %16 : vector<1x16xf32> to vector<1x1x16xf32>
      %c0_15 = arith.constant 0 : index
      %c0_16 = arith.constant 0 : index
      %c0_17 = arith.constant 0 : index
      %18 = vector.load %arg4[%c0_15, %c0_16, %c0_17] : memref<1x1x16xf32, #tpu.memory_space<vmem>>, vector<1x1x16xf32>
      tpu.vector_store %arg4[%c0_15, %c0_16, %c0_17], %17 {strides = array<i32>} : memref<1x1x16xf32, #tpu.memory_space<vmem>>, vector<1x1x16xf32>,
    } else {
    }
    return
  }
  func.func @transform_0(%arg0: i32, %arg1: i32) -> (i32, i32, i32) {
    %c0_i32 = arith.constant 0 : i32
    %c0_i32_0 = arith.constant 0 : i32
    return %arg0, %arg1, %c0_i32 : i32, i32, i32
  }
  func.func @transform_1(%arg0: i32, %arg1: i32) -> (i32, i32, i32) {
    %c0_i32 = arith.constant 0 : i32
    %c0_i32_0 = arith.constant 0 : i32
    return %arg0, %arg1, %c0_i32 : i32, i32, i32
  }
  func.func @transform_2(%arg0: i32, %arg1: i32) -> (i32, i32, i32) {
    %c0_i32 = arith.constant 0 : i32
    %c0_i32_0 = arith.constant 0 : i32
    %c0_i32_1 = arith.constant 0 : i32
    return %arg0, %c0_i32, %c0_i32_0 : i32, i32, i32
  }
}

</mosaic_0001>

<llo_original>
// kernel: tpu_custom_call.1
$region0: #{tpu_custom_call.1}
  #allocation0 [shape = 'u32[]', space=smem, size = 0x4, offset = 0x4, fixed_abs, tag = 'smem constant byte address 0x4 - core index']
  #allocation1 [shape = 'u32[72,128]{1,0:T(1,128)}', space=vmem, size = 0x9000, scoped, tag = 'internal scratch']
  #allocation2 [shape = 'f32[8,16]{1,0:T(8,128)}', space=vmem, size = 0x1000, scoped, tag = 'scratch operand']
  %s0 = inlined_call_operand.hbm [shape: f32[8,16,16], index: 0, kind: input, shape index: {}]
  %s1 = inlined_call_operand.hbm [shape: f32[8,16,16], index: 1, kind: input, shape index: {}]
  %s2 = inlined_call_operand.hbm [shape: f32[1,1,16], index: 2, kind: output, shape index: {}]
  %s3 = sld [smem:[#allocation0]]
  $region34: #{tpu_custom_call.1} parent=0
    _
  %s5 = ssub.s32 1, %s3
  %s6 = scalar_select 0, %s5, %s3
  $region1: #{tpu_custom_call.1} parent=0
    #allocation3 [shape = 'u8[65536]{0}', space=vmem, size = 0x10000, scoped, tag = 'input window, operand 0, single buffered']
    #allocation4 [shape = 's32[1]{0}', space=sflag, size = 0x4, scoped, tag = 'scoped memory for tpu_custom_call.1']
    #allocation5 [shape = 's32[1]{0}', space=sflag, size = 0x4, scoped, tag = 'scoped memory for tpu_custom_call.1']
    #allocation6 [shape = 'u8[65536]{0}', space=vmem, size = 0x10000, scoped, tag = 'input window, operand 1, single buffered']
    #allocation7 [shape = 's32[1]{0}', space=sflag, size = 0x4, scoped, tag = 'scoped memory for tpu_custom_call.1']
    #allocation8 [shape = 'u8[512]{0}', space=vmem, size = 0x400, scoped, tag = 'output window, operand 0, single buffered']
    %7 = vsyncpa [#allocation4], 0
    %8 = vsyncpa [#allocation7], 0
    %9 = vsyncpa [#allocation5], 0
    // Predicated region
    $region2: #{tpu_custom_call.1} parent=1 // pred_check
      _
    $region3: #{tpu_custom_call.1} parent=1 // pred_check_branch
      %11 = sbr.rel (0) target = $region5
    $region4: #{tpu_custom_call.1} parent=1 // pred_region
      %13 = vsyncadd [#allocation4], 0
      %s14 = sshll.u32 %s0, 4
      %s15 = int_to_ptr.hbm [resolvable:$true] %s14
      %s16 = sshll.u32 [#allocation3], 4
      %s17 = int_to_ptr.vmem [resolvable:$true] %s16
      %22 = dma.hbm_to_vmem [thread:$0]  %s15, 2048, %s17, [#allocation4], 128, 128, 8
    $region5: #{tpu_custom_call.1} parent=1 // pred_fallthru
      _
    // Predicated region
    $region6: #{tpu_custom_call.1} parent=1 // pred_check
      _
    $region7: #{tpu_custom_call.1} parent=1 // pred_check_branch
      %24 = sbr.rel (0) target = $region9
    $region8: #{tpu_custom_call.1} parent=1 // pred_region
      %26 = vsyncadd [#allocation7], 0
      %s27 = sshll.u32 %s1, 4
      %s28 = int_to_ptr.hbm [resolvable:$true] %s27
      %s29 = sshll.u32 [#allocation6], 4
      %s30 = int_to_ptr.vmem [resolvable:$true] %s29
      %35 = dma.hbm_to_vmem [thread:$0]  %s28, 2048, %s30, [#allocation7], 128, 128, 8
    $region9: #{tpu_custom_call.1} parent=1 // pred_fallthru
      _
    // Predicated region
    $region10: #{tpu_custom_call.1} parent=1 // pred_check
      _
    $region11: #{tpu_custom_call.1} parent=1 // pred_check_branch
      %37 = sbr.rel (0) target = $region13
    $region12: #{tpu_custom_call.1} parent=1 // pred_region
      %39 = dma.done [#allocation4], 2048
    $region13: #{tpu_custom_call.1} parent=1 // pred_fallthru
      _
    // Predicated region
    $region14: #{tpu_custom_call.1} parent=1 // pred_check
      _
    $region15: #{tpu_custom_call.1} parent=1 // pred_check_branch
      %41 = sbr.rel (0) target = $region17
    $region16: #{tpu_custom_call.1} parent=1 // pred_region
      %43 = dma.done [#allocation7], 2048
    $region17: #{tpu_custom_call.1} parent=1 // pred_fallthru
      _
    %p44 = scmp.eq.s32.totalorder 0, 0
    // Predicated region
    $region18: #{tpu_custom_call.1} parent=1 // pred_check
      %p45 = pneg %p44
    $region19: #{tpu_custom_call.1} parent=1 // pred_check_branch
      %47 = sbr.rel (%p45) target = $region21
    $region20: #{tpu_custom_call.1} parent=1 // pred_region
      %vm48 = vcmask 130048
      %49 = vst.msk [vmem:[#allocation2] sm:$0xff] %vm48, 0.0
    $region21: #{tpu_custom_call.1} parent=1 // pred_fallthru
      _
    %v50 = vld [vmem:[#allocation3] sm:$0xff]
    %v51 = vld [vmem:[#allocation3 + $0x8] sm:$0xff]
    %v52 = vld [vmem:[#allocation3 + $0x10] sm:$0xff]
    %v53 = vld [vmem:[#allocation3 + $0x18] sm:$0xff]
    %v54 = vld [vmem:[#allocation3 + $0x20] sm:$0xff]
    %v55 = vld [vmem:[#allocation3 + $0x28] sm:$0xff]
    %v56 = vld [vmem:[#allocation3 + $0x30] sm:$0xff]
    %v57 = vld [vmem:[#allocation3 + $0x38] sm:$0xff]
    %v58 = vld [vmem:[#allocation3 + $0x40] sm:$0xff]
    %v59 = vld [vmem:[#allocation3 + $0x48] sm:$0xff]
    %v60 = vld [vmem:[#allocation3 + $0x50] sm:$0xff]
    %v61 = vld [vmem:[#allocation3 + $0x58] sm:$0xff]
    %v62 = vld [vmem:[#allocation3 + $0x60] sm:$0xff]
    %v63 = vld [vmem:[#allocation3 + $0x68] sm:$0xff]
    %v64 = vld [vmem:[#allocation3 + $0x70] sm:$0xff]
    %v65 = vld [vmem:[#allocation3 + $0x78] sm:$0xff]
    %v66 = vld [vmem:[#allocation6] sm:$0xff]
    %v67 = vld [vmem:[#allocation6 + $0x8] sm:$0xff]
    %v68 = vld [vmem:[#allocation6 + $0x10] sm:$0xff]
    %v69 = vld [vmem:[#allocation6 + $0x18] sm:$0xff]
    %v70 = vld [vmem:[#allocation6 + $0x20] sm:$0xff]
    %v71 = vld [vmem:[#allocation6 + $0x28] sm:$0xff]
    %v72 = vld [vmem:[#allocation6 + $0x30] sm:$0xff]
    %v73 = vld [vmem:[#allocation6 + $0x38] sm:$0xff]
    %v74 = vld [vmem:[#allocation6 + $0x40] sm:$0xff]
    %v75 = vld [vmem:[#allocation6 + $0x48] sm:$0xff]
    %v76 = vld [vmem:[#allocation6 + $0x50] sm:$0xff]
    %v77 = vld [vmem:[#allocation6 + $0x58] sm:$0xff]
    %v78 = vld [vmem:[#allocation6 + $0x60] sm:$0xff]
    %v79 = vld [vmem:[#allocation6 + $0x68] sm:$0xff]
    %v80 = vld [vmem:[#allocation6 + $0x70] sm:$0xff]
    %v81 = vld [vmem:[#allocation6 + $0x78] sm:$0xff]
    %v82 = vsub.f32 %v50, %v66
    %v83 = vsub.f32 %v51, %v67
    %v84 = vsub.f32 %v52, %v68
    %v85 = vsub.f32 %v53, %v69
    %v86 = vsub.f32 %v54, %v70
    %v87 = vsub.f32 %v55, %v71
    %v88 = vsub.f32 %v56, %v72
    %v89 = vsub.f32 %v57, %v73
    %v90 = vsub.f32 %v58, %v74
    %v91 = vsub.f32 %v59, %v75
    %v92 = vsub.f32 %v60, %v76
    %v93 = vsub.f32 %v61, %v77
    %v94 = vsub.f32 %v62, %v78
    %v95 = vsub.f32 %v63, %v79
    %v96 = vsub.f32 %v64, %v80
    %v97 = vsub.f32 %v65, %v81
    %v98 = vld [vmem:[#allocation2] sm:$0xff]
    %vm99 = vcmask 130048
    %v100 = vsel %vm99, %v82, 0.0
    %v101 = vsel %vm99, %v83, 0.0
    %v102 = vadd.f32 %v100, %v101
    %v103 = vrot.slane %v102, 4
    %v104 = vadd.f32 %v102, %v103
    %v105 = vrot.slane %v104, 2
    %v106 = vadd.f32 %v104, %v105
    %v107 = vrot.slane %v106, 1
    %v108 = vadd.f32 %v106, %v107
    %v109 = vsel %vm99, %v84, 0.0
    %v110 = vsel %vm99, %v85, 0.0
    %v111 = vadd.f32 %v109, %v110
    %v112 = vrot.slane %v111, 4
    %v113 = vadd.f32 %v111, %v112
    %v114 = vrot.slane %v113, 2
    %v115 = vadd.f32 %v113, %v114
    %v116 = vrot.slane %v115, 1
    %v117 = vadd.f32 %v115, %v116
    %v118 = vsel %vm99, %v86, 0.0
    %v119 = vsel %vm99, %v87, 0.0
    %v120 = vadd.f32 %v118, %v119
    %v121 = vrot.slane %v120, 4
    %v122 = vadd.f32 %v120, %v121
    %v123 = vrot.slane %v122, 2
    %v124 = vadd.f32 %v122, %v123
    %v125 = vrot.slane %v124, 1
    %v126 = vadd.f32 %v124, %v125
    %v127 = vsel %vm99, %v88, 0.0
    %v128 = vsel %vm99, %v89, 0.0
    %v129 = vadd.f32 %v127, %v128
    %v130 = vrot.slane %v129, 4
    %v131 = vadd.f32 %v129, %v130
    %v132 = vrot.slane %v131, 2
    %v133 = vadd.f32 %v131, %v132
    %v134 = vrot.slane %v133, 1
    %v135 = vadd.f32 %v133, %v134
    %v136 = vsel %vm99, %v90, 0.0
    %v137 = vsel %vm99, %v91, 0.0
    %v138 = vadd.f32 %v136, %v137
    %v139 = vrot.slane %v138, 4
    %v140 = vadd.f32 %v138, %v139
    %v141 = vrot.slane %v140, 2
    %v142 = vadd.f32 %v140, %v141
    %v143 = vrot.slane %v142, 1
    %v144 = vadd.f32 %v142, %v143
    %v145 = vsel %vm99, %v92, 0.0
    %v146 = vsel %vm99, %v93, 0.0
    %v147 = vadd.f32 %v145, %v146
    %v148 = vrot.slane %v147, 4
    %v149 = vadd.f32 %v147, %v148
    %v150 = vrot.slane %v149, 2
    %v151 = vadd.f32 %v149, %v150
    %v152 = vrot.slane %v151, 1
    %v153 = vadd.f32 %v151, %v152
    %v154 = vsel %vm99, %v94, 0.0
    %v155 = vsel %vm99, %v95, 0.0
    %v156 = vadd.f32 %v154, %v155
    %v157 = vrot.slane %v156, 4
    %v158 = vadd.f32 %v156, %v157
    %v159 = vrot.slane %v158, 2
    %v160 = vadd.f32 %v158, %v159
    %v161 = vrot.slane %v160, 1
    %v162 = vadd.f32 %v160, %v161
    %v163 = vsel %vm99, %v96, 0.0
    %v164 = vsel %vm99, %v97, 0.0
    %v165 = vadd.f32 %v163, %v164
    %v166 = vrot.slane %v165, 4
    %v167 = vadd.f32 %v165, %v166
    %v168 = vrot.slane %v167, 2
    %v169 = vadd.f32 %v167, %v168
    %v170 = vrot.slane %v169, 1
    %v171 = vadd.f32 %v169, %v170
    %vm180 = vcmask 1041409
    %v181 = vsel %vm180, %v117, %v108
    %vm182 = vcmask 1042434
    %v183 = vsel %vm182, %v126, %v181
    %vm184 = vcmask 1043459
    %v185 = vsel %vm184, %v135, %v183
    %vm186 = vcmask 1044484
    %v187 = vsel %vm186, %v144, %v185
    %vm188 = vcmask 1045509
    %v189 = vsel %vm188, %v153, %v187
    %vm190 = vcmask 1046534
    %v191 = vsel %vm190, %v162, %v189
    %vm192 = vcmask 1047559
    %v193 = vsel %vm192, %v171, %v191
    %v195 = vadd.f32 %v98, %v193
    %196 = vst.msk [vmem:[#allocation2] sm:$0xff] %vm99, %v195
    // Predicated region
    $region22: #{tpu_custom_call.1} parent=1 // pred_check
      %p197 = pneg %p44
    $region23: #{tpu_custom_call.1} parent=1 // pred_check_branch
      %199 = sbr.rel (%p197) target = $region25
    $region24: #{tpu_custom_call.1} parent=1 // pred_region
      %v200 = vld [vmem:[#allocation2] sm:$0xff]
      %v201 = vmul.f32 %v200, %v200
      %v202 = vsel %vm99, %v201, 0.0
      %v203 = vrot.slane %v202, 4
      %v204 = vadd.f32 %v202, %v203
      %v205 = vrot.slane %v204, 2
      %v206 = vadd.f32 %v204, %v205
      %v207 = vrot.slane %v206, 1
      %v208 = vadd.f32 %v206, %v207
      %vm209 = vcmask 122880
      %210 = vst.msk [vmem:[#allocation8] sm:$0x1] %vm209, %v208
    $region25: #{tpu_custom_call.1} parent=1 // pred_fallthru
      _
    // Predicated region
    $region26: #{tpu_custom_call.1} parent=1 // pred_check
      _
    $region27: #{tpu_custom_call.1} parent=1 // pred_check_branch
      %212 = sbr.rel (0) target = $region29
    $region28: #{tpu_custom_call.1} parent=1 // pred_region
      %214 = vsyncadd [#allocation5], 0
      %s216 = sshll.u32 [#allocation8], 4
      %s217 = int_to_ptr.vmem [resolvable:$true] %s216
      %s218 = sshll.u32 %s2, 4
      %s219 = int_to_ptr.hbm [resolvable:$true] %s218
      %221 = dma.vmem_to_hbm [thread:$0]  %s217, 16, %s219, [#allocation5]
    $region29: #{tpu_custom_call.1} parent=1 // pred_fallthru
      _
    // Predicated region
    $region30: #{tpu_custom_call.1} parent=1 // pred_check
      _
    $region31: #{tpu_custom_call.1} parent=1 // pred_check_branch
      %223 = sbr.rel (0) target = $region33
    $region32: #{tpu_custom_call.1} parent=1 // pred_region
      %225 = dma.done [#allocation5], 16
    $region33: #{tpu_custom_call.1} parent=1 // pred_fallthru
      _
    %226 = vsyncpa [#allocation4], 1
    %227 = vsyncpa [#allocation7], 1
    %228 = vsyncpa [#allocation5], 1

</llo_original>
